<compile_context>
chip_gen: v7x
topology: tpu7x:2x2x1
jax: 0.10.0
libtpu: 0.0.40
codegen_flags: <defaults>
</compile_context>

<pallas_src>
import numpy as np
import jax
import jax.numpy as jnp
from jax import lax
from jax.experimental import pallas as pl
from jax.experimental.pallas import tpu as pltpu


# ----------------------------------------------------------------------------
# Pallas kernel: conv1 -> relu -> conv2 -> relu -> maxpool -> fused fc/q_fc/cat
# (entire batch in one invocation)
# ----------------------------------------------------------------------------
def _hybrid_encoder_kernel(x_ref, qz_ref, w1_ref, b1_ref, w2_ref, b2_ref,
                           wbig_ref, bbig_ref, out_ref):
    f32 = jnp.float32
    B, L, _ = x_ref.shape          # (B, L, 1)
    K, C1 = w1_ref.shape           # (K, C1)
    F, C2 = w2_ref.shape           # (K*C1, C2)
    Lh = L // 2
    pad = K // 2

    x = x_ref[...]                 # (B, L, 1)

    # ---- conv1 (Cin=1) + ReLU: padded buffer im2col + ONE tiny MXU matmul ----
    # cols1[b, l, k] = x[b, l + k - pad]  (zero outside [0, L))
    zx = jnp.zeros((B, pad, 1), f32)
    xpad = jnp.concatenate([zx, x, zx], axis=1)                   # (B, L+K-1, 1)
    cols1 = jnp.concatenate([xpad[:, k:k + L, :] for k in range(K)],
                            axis=-1)                              # (B, L, K)
    h1 = jnp.dot(cols1.reshape(B * L, K), w1_ref[...],
                 preferred_element_type=f32)                      # (B*L, C1)
    h1 = jnp.maximum(h1 + b1_ref[...], 0.0).reshape(B, L, C1)     # (B, L, C1)

    # ---- conv2 + ReLU: padded buffer im2col + ONE MXU matmul ----
    zh = jnp.zeros((B, pad, C1), f32)
    h1pad = jnp.concatenate([zh, h1, zh], axis=1)                 # (B, L+K-1, C1)
    cols2 = jnp.concatenate([h1pad[:, k:k + L, :] for k in range(K)],
                            axis=-1)                              # (B, L, K*C1)
    h2 = jnp.dot(cols2.reshape(B * L, F), w2_ref[...],
                 preferred_element_type=f32)                      # (B*L, C2)
    h2 = jnp.maximum(h2 + b2_ref[...], 0.0).reshape(B, L, C2)     # (B, L, C2)

    # ---- MaxPool1d(2, 2): ONE bulk VPU max over sublane-shifted views, then a
    # lane-dense flatten.  m[:, 2i, :] = max(h2[:, 2i, :], h2[:, 2i+1, :]).
    m = jnp.maximum(h2[:, :L - 1, :], h2[:, 1:, :])               # (B, L-1, C2)
    flat = jnp.concatenate([m[:, 2 * i, :] for i in range(Lh)],
                           axis=-1)                               # (B, Lh*C2)

    # ---- fused fc + q_fc + concat: ONE matmul, ONE lane-dense store ----
    # wbig is block-diagonal: [wfc[:, :half] | 0 ; 0 | wq.T]; bias = [bfc[:half], bq].
    fused_in = jnp.concatenate([flat, qz_ref[...]], axis=-1)      # (B, Lh*C2+nq)
    out_ref[...] = (jnp.dot(fused_in, wbig_ref[...],
                            preferred_element_type=f32) + bbig_ref[...])


# ----------------------------------------------------------------------------
# Exact 4-qubit statevector simulation of the PennyLane circuit (plain JAX glue)
#   AngleEmbedding (RX) + BasicEntanglerLayers (RX + CNOT ring) + <Z_i>
# ----------------------------------------------------------------------------
_CNOT4 = np.array([[1, 0, 0, 0],
                   [0, 1, 0, 0],
                   [0, 0, 0, 1],
                   [0, 0, 1, 0]], np.complex64).reshape(2, 2, 2, 2)


def _rx(theta):
    c = jnp.cos(theta / 2).astype(jnp.complex64)
    ms = jnp.complex64(-1j) * jnp.sin(theta / 2).astype(jnp.complex64)
    return jnp.stack([jnp.stack([c, ms]), jnp.stack([ms, c])])


def _apply_1q(state, gate, wire):
    state = jnp.tensordot(gate, state, axes=[[1], [wire]])
    return jnp.moveaxis(state, 0, wire)


def _apply_cnot(state, c, t):
    state = jnp.tensordot(jnp.asarray(_CNOT4), state, axes=[[2, 3], [c, t]])
    return jnp.moveaxis(state, [0, 1], [c, t])


def quantum_circuit(inputs, weights):
    """inputs: (n_qubits,), weights: (n_layers, n_qubits) -> (n_qubits,) <Z_i>."""
    n = inputs.shape[0]
    state = jnp.zeros((2,) * n, jnp.complex64).at[(0,) * n].set(1.0 + 0.0j)
    for i in range(n):                      # AngleEmbedding (rotation='X')
        state = _apply_1q(state, _rx(inputs[i]), i)
    for layer in range(weights.shape[0]):   # BasicEntanglerLayers
        for i in range(n):
            state = _apply_1q(state, _rx(weights[layer, i]), i)
        for i in range(n):
            state = _apply_cnot(state, i, (i + 1) % n)
    probs = jnp.real(state * jnp.conj(state))
    outs = []
    for w in range(n):
        z = jnp.array([1.0, -1.0], jnp.float32).reshape(
            (1,) * w + (2,) + (1,) * (n - w - 1))
        outs.append(jnp.sum(probs * z))
    return jnp.stack(outs)


# ----------------------------------------------------------------------------
# Wrapper: layout-only glue + single gridless pallas_call, all under jax.jit
# ----------------------------------------------------------------------------
def _encode(x_cnn, x_qcnn, params):
    """x_cnn: (B, 1, L) NCL float32, x_qcnn: (B, n_qubits) float32."""
    f32 = jnp.float32
    B, _, L = x_cnn.shape
    w1, b1 = params["w1"], params["b1"]
    w2, b2 = params["w2"], params["b2"]
    wfc, bfc = params["wfc"], params["bfc"]
    wq, bq = params["wq"], params["bq"]
    C1, _, K = w1.shape
    C2 = w2.shape[0]
    latent = wfc.shape[0]
    half, nq = wq.shape
    Lh = L // 2

    # --- glue: layout / weight-reordering only (fused under jit; hoist out of
    # the per-call path if params are static in your serving setup) ---
    x_blc = jnp.transpose(x_cnn, (0, 2, 1)).astype(f32)                 # (B, L, 1)
    # conv1 weight: row k, col cout  ->  w1[cout, 0, k]
    w1_2d = jnp.transpose(w1, (2, 1, 0)).reshape(K, C1).astype(f32)     # (K, C1)
    # conv2 im2col weight: row k*C1 + cin  ->  w2[cout, cin, k]
    w2_2d = jnp.transpose(w2, (2, 1, 0)).reshape(K * C1, C2).astype(f32)
    # torch flattening is channel-major (flat = c*Lh + l); kernel's flat is l*C2 + c.
    wfc_2d = jnp.transpose(wfc.reshape(latent, C2, Lh),
                           (2, 1, 0)).reshape(Lh * C2, latent).astype(f32)
    # Fused fc + q_fc + concat: block-diagonal weight; only the USED first
    # `half` fc columns are kept (xc[:, half:] is discarded by the concat).
    w_big = jnp.zeros((Lh * C2 + nq, 2 * half), f32)
    w_big = w_big.at[:Lh * C2, :half].set(wfc_2d[:, :half])
    w_big = w_big.at[Lh * C2:, half:].set(wq.T.astype(f32))
    b_big = jnp.concatenate([bfc[:half].astype(f32),
                             bq.astype(f32)]).reshape(1, 2 * half)

    # quantum expectation values (exact statevector sim, glue)
    qz = jax.vmap(quantum_circuit, in_axes=(0, None))(
        x_qcnn.astype(f32), params["qw"].astype(f32))                   # (B, nq)

    # TODO(synk): original torch code does cat((x_cnn[:, 40 // 2], q_encoded), dim=1)
    # which is out-of-bounds (index 20 of a 20-dim tensor) and rank-mismatched;
    # implemented here as cat((x_cnn_fc[:, :latent_dim // 2], q_encoded), dim=1).
    vmem = pltpu.MemorySpace.VMEM
    return pl.pallas_call(
        _hybrid_encoder_kernel,
        out_shape=jax.ShapeDtypeStruct((B, 2 * half), f32),
        in_specs=[pl.BlockSpec(memory_space=vmem)] * 8,
        out_specs=pl.BlockSpec(memory_space=vmem),
    )(x_blc, qz,
      w1_2d, b1.reshape(1, C1).astype(f32),
      w2_2d, b2.reshape(1, C2).astype(f32),
      w_big, b_big)


gencoder_encoder = jax.jit(_encode)


# ----------------------------------------------------------------------------
# Pure-JAX reference (independent path via lax.conv) for a correctness check
# ----------------------------------------------------------------------------
def reference_forward(x_cnn, x_qcnn, params):
    hp = lax.Precision.HIGHEST
    h = lax.conv_general_dilated(x_cnn, params["w1"], (1,), [(2, 2)],
                                 dimension_numbers=("NCH", "OIH", "NCH"),
                                 precision=hp)
    h = jax.nn.relu(h + params["b1"][None, :, None])
    h = lax.conv_general_dilated(h, params["w2"], (1,), [(2, 2)],
                                 dimension_numbers=("NCH", "OIH", "NCH"),
                                 precision=hp)
    h = jax.nn.relu(h + params["b2"][None, :, None])
    B, C, L = h.shape
    pooled = h.reshape(B, C, L // 2, 2).max(axis=-1)
    flat = pooled.reshape(B, -1)
    xc = jnp.dot(flat, params["wfc"].T, precision=hp) + params["bfc"]
    qz = jax.vmap(quantum_circuit, in_axes=(0, None))(x_qcnn, params["qw"])
    qe = jnp.dot(qz, params["wq"].T, precision=hp) + params["bq"]
    half = params["wq"].shape[0]
    return jnp.concatenate([xc[:, :half], qe], axis=1)


if __name__ == "__main__":
    B, L = 2, 16                 # small: input_length=16 (even), batch=2
    LATENT, NQ, NLAYERS = 20, 4, 2

    key = jax.random.PRNGKey(0)
    ks = jax.random.split(key, 11)
    params = {
        "w1": 0.2 * jax.random.normal(ks[0], (32, 1, 5), jnp.float32),
        "b1": 0.1 * jax.random.normal(ks[1], (32,), jnp.float32),
        "w2": 0.1 * jax.random.normal(ks[2], (64, 32, 5), jnp.float32),
        "b2": 0.1 * jax.random.normal(ks[3], (64,), jnp.float32),
        "wfc": 0.05 * jax.random.normal(ks[4], (LATENT, 64 * (L // 2)), jnp.float32),
        "bfc": 0.05 * jax.random.normal(ks[5], (LATENT,), jnp.float32),
        "wq": 0.2 * jax.random.normal(ks[6], (LATENT // 2, NQ), jnp.float32),
        "bq": 0.1 * jax.random.normal(ks[7], (LATENT // 2,), jnp.float32),
        "qw": 0.01 * jax.random.normal(ks[8], (NLAYERS, NQ), jnp.float32),
    }
    x_cnn = jax.random.normal(ks[9], (B, 1, L), jnp.float32)    # NCL like PyTorch
    x_qcnn = jax.random.normal(ks[10], (B, NQ), jnp.float32)

    out = jax.block_until_ready(gencoder_encoder(x_cnn, x_qcnn, params))
    ref = jax.block_until_ready(reference_forward(x_cnn, x_qcnn, params))

    assert out.shape == (B, LATENT), out.shape
    assert np.allclose(np.asarray(out), np.asarray(ref), atol=2e-3, rtol=2e-3), (
        "max abs err = %g" % np.max(np.abs(np.asarray(out) - np.asarray(ref))))
    print("KERNEL_OK")
</pallas_src>

<mosaic_0001>
module attributes {stable_mosaic.version = 11 : i64} {
  func.func @_hybrid_encoder_kernel(%arg0: memref<2x16x1xf32, #tpu.memory_space<vmem>>, %arg1: memref<2x4xf32, #tpu.memory_space<vmem>>, %arg2: memref<5x32xf32, #tpu.memory_space<vmem>>, %arg3: memref<1x32xf32, #tpu.memory_space<vmem>>, %arg4: memref<160x64xf32, #tpu.memory_space<vmem>>, %arg5: memref<1x64xf32, #tpu.memory_space<vmem>>, %arg6: memref<516x20xf32, #tpu.memory_space<vmem>>, %arg7: memref<1x20xf32, #tpu.memory_space<vmem>>, %arg8: memref<2x20xf32, #tpu.memory_space<vmem>>) attributes {dimension_semantics = [], scalar_prefetch = 0 : i64, scratch_operands = 0 : i64, tpu.core_type = #tpu.core_type<tc>} {
    %c0 = arith.constant 0 : index
    %c0_0 = arith.constant 0 : index
    %c0_1 = arith.constant 0 : index
    %0 = vector.load %arg0[%c0, %c0_0, %c0_1] : memref<2x16x1xf32, #tpu.memory_space<vmem>>, vector<2x16x1xf32>
    %cst = arith.constant 0.000000e+00 : f32
    %1 = vector.broadcast %cst : f32 to vector<2x2x1xf32>
    %2 = tpu.concatenate %1, %0, %1 in 1 : vector<2x2x1xf32>, vector<2x16x1xf32>, vector<2x2x1xf32> -> vector<2x20x1xf32>
    %3 = vector.extract_strided_slice %2 {offsets = [0, 0, 0], sizes = [2, 16, 1], strides = [1, 1, 1]} : vector<2x20x1xf32> to vector<2x16x1xf32>
    %4 = vector.extract_strided_slice %2 {offsets = [0, 1, 0], sizes = [2, 16, 1], strides = [1, 1, 1]} : vector<2x20x1xf32> to vector<2x16x1xf32>
    %5 = vector.extract_strided_slice %2 {offsets = [0, 2, 0], sizes = [2, 16, 1], strides = [1, 1, 1]} : vector<2x20x1xf32> to vector<2x16x1xf32>
    %6 = vector.extract_strided_slice %2 {offsets = [0, 3, 0], sizes = [2, 16, 1], strides = [1, 1, 1]} : vector<2x20x1xf32> to vector<2x16x1xf32>
    %7 = vector.extract_strided_slice %2 {offsets = [0, 4, 0], sizes = [2, 16, 1], strides = [1, 1, 1]} : vector<2x20x1xf32> to vector<2x16x1xf32>
    %8 = tpu.concatenate %3, %4, %5, %6, %7 in 2 : vector<2x16x1xf32>, vector<2x16x1xf32>, vector<2x16x1xf32>, vector<2x16x1xf32>, vector<2x16x1xf32> -> vector<2x16x5xf32>
    %9 = vector.shape_cast %8 : vector<2x16x5xf32> to vector<32x5xf32>
    %c0_2 = arith.constant 0 : index
    %c0_3 = arith.constant 0 : index
    %10 = vector.load %arg2[%c0_2, %c0_3] : memref<5x32xf32, #tpu.memory_space<vmem>>, vector<5x32xf32>
    %cst_4 = arith.constant dense<0.000000e+00> : vector<32x32xf32>
    %11 = tpu.matmul %9, %10, %cst_4 {dimension_numbers = #tpu.dot_dimension_numbers<[1], [0], [0], [1], [0, 0, 1, 1], [], []>} : vector<32x5xf32>, vector<5x32xf32>, vector<32x32xf32> -> vector<32x32xf32>
    %c0_5 = arith.constant 0 : index
    %c0_6 = arith.constant 0 : index
    %12 = vector.load %arg3[%c0_5, %c0_6] : memref<1x32xf32, #tpu.memory_space<vmem>>, vector<1x32xf32>
    %13 = vector.broadcast %12 : vector<1x32xf32> to vector<32x32xf32>
    %14 = arith.addf %11, %13 : vector<32x32xf32>
    %cst_7 = arith.constant 0.000000e+00 : f32
    %15 = vector.broadcast %cst_7 : f32 to vector<32x32xf32>
    %16 = arith.maximumf %14, %15 : vector<32x32xf32>
    %17 = vector.shape_cast %16 : vector<32x32xf32> to vector<2x16x32xf32>
    %cst_8 = arith.constant 0.000000e+00 : f32
    %18 = vector.broadcast %cst_8 : f32 to vector<2x2x32xf32>
    %19 = tpu.concatenate %18, %17, %18 in 1 : vector<2x2x32xf32>, vector<2x16x32xf32>, vector<2x2x32xf32> -> vector<2x20x32xf32>
    %20 = vector.extract_strided_slice %19 {offsets = [0, 0, 0], sizes = [2, 16, 32], strides = [1, 1, 1]} : vector<2x20x32xf32> to vector<2x16x32xf32>
    %21 = vector.extract_strided_slice %19 {offsets = [0, 1, 0], sizes = [2, 16, 32], strides = [1, 1, 1]} : vector<2x20x32xf32> to vector<2x16x32xf32>
    %22 = vector.extract_strided_slice %19 {offsets = [0, 2, 0], sizes = [2, 16, 32], strides = [1, 1, 1]} : vector<2x20x32xf32> to vector<2x16x32xf32>
    %23 = vector.extract_strided_slice %19 {offsets = [0, 3, 0], sizes = [2, 16, 32], strides = [1, 1, 1]} : vector<2x20x32xf32> to vector<2x16x32xf32>
    %24 = vector.extract_strided_slice %19 {offsets = [0, 4, 0], sizes = [2, 16, 32], strides = [1, 1, 1]} : vector<2x20x32xf32> to vector<2x16x32xf32>
    %25 = tpu.concatenate %20, %21, %22, %23, %24 in 2 : vector<2x16x32xf32>, vector<2x16x32xf32>, vector<2x16x32xf32>, vector<2x16x32xf32>, vector<2x16x32xf32> -> vector<2x16x160xf32>
    %26 = vector.shape_cast %25 : vector<2x16x160xf32> to vector<32x160xf32>
    %c0_9 = arith.constant 0 : index
    %c0_10 = arith.constant 0 : index
    %27 = vector.load %arg4[%c0_9, %c0_10] : memref<160x64xf32, #tpu.memory_space<vmem>>, vector<160x64xf32>
    %cst_11 = arith.constant dense<0.000000e+00> : vector<32x64xf32>
    %28 = tpu.matmul %26, %27, %cst_11 {dimension_numbers = #tpu.dot_dimension_numbers<[1], [0], [0], [1], [0, 0, 1, 1], [], []>} : vector<32x160xf32>, vector<160x64xf32>, vector<32x64xf32> -> vector<32x64xf32>
    %c0_12 = arith.constant 0 : index
    %c0_13 = arith.constant 0 : index
    %29 = vector.load %arg5[%c0_12, %c0_13] : memref<1x64xf32, #tpu.memory_space<vmem>>, vector<1x64xf32>
    %30 = vector.broadcast %29 : vector<1x64xf32> to vector<32x64xf32>
    %31 = arith.addf %28, %30 : vector<32x64xf32>
    %cst_14 = arith.constant 0.000000e+00 : f32
    %32 = vector.broadcast %cst_14 : f32 to vector<32x64xf32>
    %33 = arith.maximumf %31, %32 : vector<32x64xf32>
    %34 = vector.shape_cast %33 : vector<32x64xf32> to vector<2x16x64xf32>
    %35 = vector.extract_strided_slice %34 {offsets = [0, 0, 0], sizes = [2, 15, 64], strides = [1, 1, 1]} : vector<2x16x64xf32> to vector<2x15x64xf32>
    %36 = vector.extract_strided_slice %34 {offsets = [0, 1, 0], sizes = [2, 15, 64], strides = [1, 1, 1]} : vector<2x16x64xf32> to vector<2x15x64xf32>
    %37 = arith.maximumf %35, %36 : vector<2x15x64xf32>
    %38 = vector.extract_strided_slice %37 {offsets = [0, 0, 0], sizes = [2, 1, 64], strides = [1, 1, 1]} : vector<2x15x64xf32> to vector<2x1x64xf32>
    %39 = vector.shape_cast %38 : vector<2x1x64xf32> to vector<2x64xf32>
    %40 = vector.extract_strided_slice %37 {offsets = [0, 2, 0], sizes = [2, 1, 64], strides = [1, 1, 1]} : vector<2x15x64xf32> to vector<2x1x64xf32>
    %41 = vector.shape_cast %40 : vector<2x1x64xf32> to vector<2x64xf32>
    %42 = vector.extract_strided_slice %37 {offsets = [0, 4, 0], sizes = [2, 1, 64], strides = [1, 1, 1]} : vector<2x15x64xf32> to vector<2x1x64xf32>
    %43 = vector.shape_cast %42 : vector<2x1x64xf32> to vector<2x64xf32>
    %44 = vector.extract_strided_slice %37 {offsets = [0, 6, 0], sizes = [2, 1, 64], strides = [1, 1, 1]} : vector<2x15x64xf32> to vector<2x1x64xf32>
    %45 = vector.shape_cast %44 : vector<2x1x64xf32> to vector<2x64xf32>
    %46 = vector.extract_strided_slice %37 {offsets = [0, 8, 0], sizes = [2, 1, 64], strides = [1, 1, 1]} : vector<2x15x64xf32> to vector<2x1x64xf32>
    %47 = vector.shape_cast %46 : vector<2x1x64xf32> to vector<2x64xf32>
    %48 = vector.extract_strided_slice %37 {offsets = [0, 10, 0], sizes = [2, 1, 64], strides = [1, 1, 1]} : vector<2x15x64xf32> to vector<2x1x64xf32>
    %49 = vector.shape_cast %48 : vector<2x1x64xf32> to vector<2x64xf32>
    %50 = vector.extract_strided_slice %37 {offsets = [0, 12, 0], sizes = [2, 1, 64], strides = [1, 1, 1]} : vector<2x15x64xf32> to vector<2x1x64xf32>
    %51 = vector.shape_cast %50 : vector<2x1x64xf32> to vector<2x64xf32>
    %52 = vector.extract_strided_slice %37 {offsets = [0, 14, 0], sizes = [2, 1, 64], strides = [1, 1, 1]} : vector<2x15x64xf32> to vector<2x1x64xf32>
    %53 = vector.shape_cast %52 : vector<2x1x64xf32> to vector<2x64xf32>
    %54 = tpu.concatenate %39, %41, %43, %45, %47, %49, %51, %53 in 1 : vector<2x64xf32>, vector<2x64xf32>, vector<2x64xf32>, vector<2x64xf32>, vector<2x64xf32>, vector<2x64xf32>, vector<2x64xf32>, vector<2x64xf32> -> vector<2x512xf32>
    %c0_15 = arith.constant 0 : index
    %c0_16 = arith.constant 0 : index
    %55 = vector.load %arg1[%c0_15, %c0_16] : memref<2x4xf32, #tpu.memory_space<vmem>>, vector<2x4xf32>
    %56 = tpu.concatenate %54, %55 in 1 : vector<2x512xf32>, vector<2x4xf32> -> vector<2x516xf32>
    %c0_17 = arith.constant 0 : index
    %c0_18 = arith.constant 0 : index
    %57 = vector.load %arg6[%c0_17, %c0_18] : memref<516x20xf32, #tpu.memory_space<vmem>>, vector<516x20xf32>
    %cst_19 = arith.constant dense<0.000000e+00> : vector<2x20xf32>
    %58 = tpu.matmul %56, %57, %cst_19 {dimension_numbers = #tpu.dot_dimension_numbers<[1], [0], [0], [1], [0, 0, 1, 1], [], []>} : vector<2x516xf32>, vector<516x20xf32>, vector<2x20xf32> -> vector<2x20xf32>
    %c0_20 = arith.constant 0 : index
    %c0_21 = arith.constant 0 : index
    %59 = vector.load %arg7[%c0_20, %c0_21] : memref<1x20xf32, #tpu.memory_space<vmem>>, vector<1x20xf32>
    %60 = vector.broadcast %59 : vector<1x20xf32> to vector<2x20xf32>
    %61 = arith.addf %58, %60 : vector<2x20xf32>
    %c0_22 = arith.constant 0 : index
    %c0_23 = arith.constant 0 : index
    %62 = vector.load %arg8[%c0_22, %c0_23] : memref<2x20xf32, #tpu.memory_space<vmem>>, vector<2x20xf32>
    tpu.vector_store %arg8[%c0_22, %c0_23], %61 {strides = array<i32>} : memref<2x20xf32, #tpu.memory_space<vmem>>, vector<2x20xf32>,
    return
  }
}

</mosaic_0001>

<llo_original>
// kernel: _encode.1
$region0: #{_encode.1}
  #allocation0 [shape = 'u32[]', space=smem, size = 0x4, offset = 0x4, fixed_abs, tag = 'smem constant byte address 0x4 - core index']
  #allocation1 [shape = 'u32[144,128]{1,0:T(1,128)}', space=vmem, size = 0x12000, scoped, tag = 'internal scratch']
  %s0 = inlined_call_operand.vmem [shape: f32[2,16,1], index: 0, kind: input, shape index: {}]
  %s1 = inlined_call_operand.vmem [shape: f32[2,4], index: 1, kind: input, shape index: {}]
  %s2 = inlined_call_operand.vmem [shape: f32[5,32], index: 2, kind: input, shape index: {}]
  %s3 = inlined_call_operand.vmem [shape: f32[1,32], index: 3, kind: input, shape index: {}]
  %s4 = inlined_call_operand.vmem [shape: f32[160,64], index: 4, kind: input, shape index: {}]
  %s5 = inlined_call_operand.vmem [shape: f32[1,64], index: 5, kind: input, shape index: {}]
  %s6 = inlined_call_operand.vmem [shape: f32[516,20], index: 6, kind: input, shape index: {}]
  %s7 = inlined_call_operand.vmem [shape: f32[1,20], index: 7, kind: input, shape index: {}]
  %s8 = inlined_call_operand.hbm [shape: f32[2,20], index: 8, kind: output, shape index: {}]
  %s9 = sld [smem:[#allocation0]]
  $region42: #{_encode.1} parent=0
    _
  %s11 = ssub.s32 1, %s9
  %s12 = scalar_select 0, %s11, %s9
  $region1: #{_encode.1} parent=0
    #allocation2 [shape = 'u8[1024]{0}', space=vmem, size = 0x400, scoped, tag = 'output window, operand 0, single buffered']
    #allocation3 [shape = 's32[1]{0}', space=sflag, size = 0x4, scoped, tag = 'scoped memory for _encode.1']
    %13 = vsyncpa [#allocation3], 0
    // Predicated region
    $region2: #{_encode.1} parent=1 // pred_check
      _
    $region3: #{_encode.1} parent=1 // pred_check_branch
      %15 = sbr.rel (0) target = $region5
    $region4: #{_encode.1} parent=1 // pred_region
      _
    $region5: #{_encode.1} parent=1 // pred_fallthru
      _
    // Predicated region
    $region6: #{_encode.1} parent=1 // pred_check
      _
    $region7: #{_encode.1} parent=1 // pred_check_branch
      %17 = sbr.rel (0) target = $region9
    $region8: #{_encode.1} parent=1 // pred_region
      _
    $region9: #{_encode.1} parent=1 // pred_fallthru
      _
    // Predicated region
    $region10: #{_encode.1} parent=1 // pred_check
      _
    $region11: #{_encode.1} parent=1 // pred_check_branch
      %19 = sbr.rel (0) target = $region13
    $region12: #{_encode.1} parent=1 // pred_region
      _
    $region13: #{_encode.1} parent=1 // pred_fallthru
      _
    // Predicated region
    $region14: #{_encode.1} parent=1 // pred_check
      _
    $region15: #{_encode.1} parent=1 // pred_check_branch
      %21 = sbr.rel (0) target = $region17
    $region16: #{_encode.1} parent=1 // pred_region
      _
    $region17: #{_encode.1} parent=1 // pred_fallthru
      _
    // Predicated region
    $region18: #{_encode.1} parent=1 // pred_check
      _
    $region19: #{_encode.1} parent=1 // pred_check_branch
      %23 = sbr.rel (0) target = $region21
    $region20: #{_encode.1} parent=1 // pred_region
      _
    $region21: #{_encode.1} parent=1 // pred_fallthru
      _
    // Predicated region
    $region22: #{_encode.1} parent=1 // pred_check
      _
    $region23: #{_encode.1} parent=1 // pred_check_branch
      %25 = sbr.rel (0) target = $region25
    $region24: #{_encode.1} parent=1 // pred_region
      _
    $region25: #{_encode.1} parent=1 // pred_fallthru
      _
    // Predicated region
    $region26: #{_encode.1} parent=1 // pred_check
      _
    $region27: #{_encode.1} parent=1 // pred_check_branch
      %27 = sbr.rel (0) target = $region29
    $region28: #{_encode.1} parent=1 // pred_region
      _
    $region29: #{_encode.1} parent=1 // pred_fallthru
      _
    // Predicated region
    $region30: #{_encode.1} parent=1 // pred_check
      _
    $region31: #{_encode.1} parent=1 // pred_check_branch
      %29 = sbr.rel (0) target = $region33
    $region32: #{_encode.1} parent=1 // pred_region
      _
    $region33: #{_encode.1} parent=1 // pred_fallthru
      _
    %v30 = vld [vmem:[%s0] sm:$0xff]
    %v31 = vld [vmem:[%s0 + $0x8] sm:$0xff]
    %v32 = vld [vmem:[%s0 + $0x10] sm:$0xff]
    %v33 = vld [vmem:[%s0 + $0x18] sm:$0xff]
    %vm38 = vcmask 1041408
    %v39 = vrot.slane %v30, 6
    %v40 = vrot.slane %v31, 6
    %v41 = vsel %vm38, %v39, %v40
    %v42 = vrot.slane %v32, 6
    %v43 = vrot.slane %v33, 6
    %v44 = vsel %vm38, %v42, %v43
    %v51 = vsel %vm38, 0.0, %v39
    %v52 = vsel %vm38, 0.0, %v42
    %v53 = vsel %vm38, %v40, 0.0
    %v54 = vsel %vm38, %v43, 0.0
    %vm59 = vcmask 1046528
    %v60 = vrot.slane %v51, 1
    %v61 = vrot.slane %v41, 1
    %v62 = vsel %vm59, %v60, %v61
    %v63 = vrot.slane %v53, 1
    %v64 = vsel %vm59, %v61, %v63
    %v65 = vrot.slane %v52, 1
    %v66 = vrot.slane %v44, 1
    %v67 = vsel %vm59, %v65, %v66
    %v68 = vrot.slane %v54, 1
    %v69 = vsel %vm59, %v66, %v68
    %70 = vrot.lane.b32.xlu0 %v62, 1
    %v71 = vpop.permute.xlu0 %70
    %72 = vrot.lane.b32.xlu0 %v64, 1
    %v73 = vpop.permute.xlu0 %72
    %74 = vrot.lane.b32.xlu0 %v67, 1
    %v75 = vpop.permute.xlu0 %74
    %76 = vrot.lane.b32.xlu0 %v69, 1
    %v77 = vpop.permute.xlu0 %76
    %vm82 = vcmask 1045504
    %v83 = vrot.slane %v51, 2
    %v84 = vrot.slane %v41, 2
    %v85 = vsel %vm82, %v83, %v84
    %v86 = vrot.slane %v53, 2
    %v87 = vsel %vm82, %v84, %v86
    %v88 = vrot.slane %v52, 2
    %v89 = vrot.slane %v44, 2
    %v90 = vsel %vm82, %v88, %v89
    %v91 = vrot.slane %v54, 2
    %v92 = vsel %vm82, %v89, %v91
    %93 = vrot.lane.b32.xlu0 %v85, 2
    %v94 = vpop.permute.xlu0 %93
    %95 = vrot.lane.b32.xlu0 %v87, 2
    %v96 = vpop.permute.xlu0 %95
    %97 = vrot.lane.b32.xlu0 %v90, 2
    %v98 = vpop.permute.xlu0 %97
    %99 = vrot.lane.b32.xlu0 %v92, 2
    %v100 = vpop.permute.xlu0 %99
    %vm105 = vcmask 1044480
    %v106 = vrot.slane %v51, 3
    %v107 = vrot.slane %v41, 3
    %v108 = vsel %vm105, %v106, %v107
    %v109 = vrot.slane %v53, 3
    %v110 = vsel %vm105, %v107, %v109
    %v111 = vrot.slane %v52, 3
    %v112 = vrot.slane %v44, 3
    %v113 = vsel %vm105, %v111, %v112
    %v114 = vrot.slane %v54, 3
    %v115 = vsel %vm105, %v112, %v114
    %116 = vrot.lane.b32.xlu0 %v108, 3
    %v117 = vpop.permute.xlu0 %116
    %118 = vrot.lane.b32.xlu0 %v110, 3
    %v119 = vpop.permute.xlu0 %118
    %120 = vrot.lane.b32.xlu0 %v113, 3
    %v121 = vpop.permute.xlu0 %120
    %122 = vrot.lane.b32.xlu0 %v115, 3
    %v123 = vpop.permute.xlu0 %122
    %vm128 = vcmask 1043456
    %v129 = vrot.slane %v51, 4
    %v130 = vrot.slane %v41, 4
    %v131 = vsel %vm128, %v129, %v130
    %v132 = vrot.slane %v53, 4
    %v133 = vsel %vm128, %v130, %v132
    %v134 = vrot.slane %v52, 4
    %v135 = vrot.slane %v44, 4
    %v136 = vsel %vm128, %v134, %v135
    %v137 = vrot.slane %v54, 4
    %v138 = vsel %vm128, %v135, %v137
    %139 = vrot.lane.b32.xlu0 %v131, 4
    %v140 = vpop.permute.xlu0 %139
    %141 = vrot.lane.b32.xlu0 %v133, 4
    %v142 = vpop.permute.xlu0 %141
    %143 = vrot.lane.b32.xlu0 %v136, 4
    %v144 = vpop.permute.xlu0 %143
    %145 = vrot.lane.b32.xlu0 %v138, 4
    %v146 = vpop.permute.xlu0 %145
    %vm151 = vcmask 7168
    %v152 = vsel %vm151, %v51, %v71
    %v153 = vsel %vm151, %v41, %v73
    %v154 = vsel %vm151, %v52, %v75
    %v155 = vsel %vm151, %v44, %v77
    %vm156 = vcmask 15360
    %v157 = vsel %vm156, %v152, %v94
    %v158 = vsel %vm156, %v153, %v96
    %v159 = vsel %vm156, %v154, %v98
    %v160 = vsel %vm156, %v155, %v100
    %vm161 = vcmask 23552
    %v162 = vsel %vm161, %v157, %v117
    %v163 = vsel %vm161, %v158, %v119
    %v164 = vsel %vm161, %v159, %v121
    %v165 = vsel %vm161, %v160, %v123
    %vm166 = vcmask 31744
    %v167 = vsel %vm166, %v162, %v140
    %v168 = vsel %vm166, %v163, %v142
    %v169 = vsel %vm166, %v164, %v144
    %v170 = vsel %vm166, %v165, %v146
    %v171 = vld [vmem:[%s2] sm:$0x1f]
    %v172 = vld [vmem:[%s3] sm:$0x1]
    %v174 = vlaneseq
    %v175 = vshrl.u32 %v174, 7
    %v176 = vsub.s32 0, %v175
    %v177 = vrot.slane %v172, %v176
    %vm179 = vcmask 39936
    %v181 = vsel %vm179, %v167, 0
    %v184 = vsel %vm179, %v168, 0
    %v187 = vsel %vm179, %v169, 0
    %v190 = vsel %vm179, %v170, 0
    %v193 = vsel %vm105, %v171, 0
    %195 = vmatprep.subr.mxu0 0.0
    %196 = vmatpush1.msra.mxu0 %v193
    %197 = vmatprep.subr.mxu0 0.0
    %198 = vmatpush1.msra.mxu0 0.0
    %199 = vmatprep.subr.mxu0 0.0
    %200 = vmatpush1.msra.mxu0 0.0
    %201 = vmatprep.subr.mxu0 0.0
    %202 = vmatpush1.msra.mxu0 0.0
    %203 = vmatprep.subr.mxu0 0.0
    %204 = vmatpush1.msra.mxu0 0.0
    %205 = vmatprep.subr.mxu0 0.0
    %206 = vmatpush1.msra.mxu0 0.0
    %207 = vmatprep.subr.mxu0 0.0
    %208 = vmatpush1.msra.mxu0 0.0
    %209 = vmatprep.subr.mxu0 0.0
    %210 = vmatpush1.msra.mxu0 0.0
    %211 = vmatprep.subr.mxu0 0.0
    %212 = vmatpush1.msra.mxu0 0.0
    %213 = vmatprep.subr.mxu0 0.0
    %214 = vmatpush1.msra.mxu0 0.0
    %215 = vmatprep.subr.mxu0 0.0
    %216 = vmatpush1.msra.mxu0 0.0
    %217 = vmatprep.subr.mxu0 0.0
    %218 = vmatpush1.msra.mxu0 0.0
    %219 = vmatprep.subr.mxu0 0.0
    %220 = vmatpush1.msra.mxu0 0.0
    %221 = vmatprep.subr.mxu0 0.0
    %222 = vmatpush1.msra.mxu0 0.0
    %223 = vmatprep.subr.mxu0 0.0
    %224 = vmatpush1.msra.mxu0 0.0
    %225 = vmatprep.subr.mxu0 0.0
    %226 = vmatpush1.msra.mxu0 0.0
    %227 = vmatprep.subr.mxu0 0.0
    %228 = vmatpush1.msra.mxu0 0.0
    %229 = vmatprep.subr.mxu0 0.0
    %230 = vmatpush1.msra.mxu0 0.0
    %231 = vmatprep.subr.mxu0 0.0
    %232 = vmatpush1.msra.mxu0 0.0
    %233 = vmatprep.subr.mxu0 0.0
    %234 = vmatpush1.msra.mxu0 0.0
    %235 = vmatprep.subr.mxu0 0.0
    %236 = vmatpush1.msra.mxu0 0.0
    %237 = vmatprep.subr.mxu0 0.0
    %238 = vmatpush1.msra.mxu0 0.0
    %239 = vmatprep.subr.mxu0 0.0
    %240 = vmatpush1.msra.mxu0 0.0
    %241 = vmatprep.subr.mxu0 0.0
    %242 = vmatpush1.msra.mxu0 0.0
    %243 = vmatprep.subr.mxu0 0.0
    %244 = vmatpush1.msra.mxu0 0.0
    %245 = vmatprep.subr.mxu0 0.0
    %246 = vmatpush1.msra.mxu0 0.0
    %247 = vmatprep.subr.mxu0 0.0
    %248 = vmatpush1.msra.mxu0 0.0
    %249 = vmatprep.subr.mxu0 0.0
    %250 = vmatpush1.msra.mxu0 0.0
    %251 = vmatprep.subr.mxu0 0.0
    %252 = vmatpush1.msra.mxu0 0.0
    %253 = vmatprep.subr.mxu0 0.0
    %254 = vmatpush1.msra.mxu0 0.0
    %255 = vmatprep.subr.mxu0 0.0
    %256 = vmatpush1.msra.mxu0 0.0
    %257 = vmatprep.subr.mxu0 0.0
    %258 = vmatpush1.msra.mxu0 0.0
    %259 = vmatprep.mubr.f32.mxu0 0.0
    %260 = vmatmul.mubr.f32.gmra.mrb[0].mxu0 %v181
    %v261 = vpop.f32.mrb[0].mxu0
    %v262 = vadd.f32 %v177, %v261
    %v263 = vpop.f32.mrb[0].mxu0
    %264 = vmatprep.mubr.f32.mxu0 0.0
    %265 = vmatmul.mubr.f32.gmra.mrb[0].mxu0 %v184
    %v266 = vpop.f32.mrb[0].mxu0
    %v267 = vadd.f32 %v177, %v266
    %v268 = vpop.f32.mrb[0].mxu0
    %269 = vmatprep.mubr.f32.mxu0 0.0
    %270 = vmatmul.mubr.f32.gmra.mrb[0].mxu0 %v187
    %v271 = vpop.f32.mrb[0].mxu0
    %v272 = vadd.f32 %v177, %v271
    %v273 = vpop.f32.mrb[0].mxu0
    %274 = vmatprep.mubr.f32.mxu0 0.0
    %275 = vmatmul.mubr.f32.gmra.mrb[0].mxu0 %v190
    %v276 = vpop.f32.mrb[0].mxu0
    %v277 = vadd.f32 %v177, %v276
    %v278 = vpop.f32.mrb[0].mxu0
    %279 = vdwg.mxu0
    %v280 = vmax.f32 %v262, 0.0
    %v281 = vmax.f32 %v267, 0.0
    %v282 = vmax.f32 %v272, 0.0
    %v283 = vmax.f32 %v277, 0.0
    %v288 = vrot.slane %v280, 6
    %v289 = vrot.slane %v281, 6
    %v290 = vsel %vm38, %v288, %v289
    %v291 = vrot.slane %v282, 6
    %v292 = vrot.slane %v283, 6
    %v293 = vsel %vm38, %v291, %v292
    %v300 = vsel %vm38, 0.0, %v288
    %v301 = vsel %vm38, 0.0, %v291
    %v302 = vsel %vm38, %v289, 0.0
    %v303 = vsel %vm38, %v292, 0.0
    %v308 = vrot.slane %v300, 1
    %v309 = vrot.slane %v290, 1
    %v310 = vsel %vm59, %v308, %v309
    %v311 = vrot.slane %v302, 1
    %v312 = vsel %vm59, %v309, %v311
    %v313 = vrot.slane %v301, 1
    %v314 = vrot.slane %v293, 1
    %v315 = vsel %vm59, %v313, %v314
    %v316 = vrot.slane %v303, 1
    %v317 = vsel %vm59, %v314, %v316
    %318 = vrot.lane.b32.xlu0 %v310, 32
    %v319 = vpop.permute.xlu0 %318
    %320 = vrot.lane.b32.xlu0 %v312, 32
    %v321 = vpop.permute.xlu0 %320
    %322 = vrot.lane.b32.xlu0 %v315, 32
    %v323 = vpop.permute.xlu0 %322
    %324 = vrot.lane.b32.xlu0 %v317, 32
    %v325 = vpop.permute.xlu0 %324
    %v330 = vrot.slane %v300, 2
    %v331 = vrot.slane %v290, 2
    %v332 = vsel %vm82, %v330, %v331
    %v333 = vrot.slane %v302, 2
    %v334 = vsel %vm82, %v331, %v333
    %v335 = vrot.slane %v301, 2
    %v336 = vrot.slane %v293, 2
    %v337 = vsel %vm82, %v335, %v336
    %v338 = vrot.slane %v303, 2
    %v339 = vsel %vm82, %v336, %v338
    %340 = vrot.lane.b32.xlu0 %v332, 64
    %v341 = vpop.permute.xlu0 %340
    %342 = vrot.lane.b32.xlu0 %v334, 64
    %v343 = vpop.permute.xlu0 %342
    %344 = vrot.lane.b32.xlu0 %v337, 64
    %v345 = vpop.permute.xlu0 %344
    %346 = vrot.lane.b32.xlu0 %v339, 64
    %v347 = vpop.permute.xlu0 %346
    %v352 = vrot.slane %v300, 3
    %v353 = vrot.slane %v290, 3
    %v354 = vsel %vm105, %v352, %v353
    %v355 = vrot.slane %v302, 3
    %v356 = vsel %vm105, %v353, %v355
    %v357 = vrot.slane %v301, 3
    %v358 = vrot.slane %v293, 3
    %v359 = vsel %vm105, %v357, %v358
    %v360 = vrot.slane %v303, 3
    %v361 = vsel %vm105, %v358, %v360
    %362 = vrot.lane.b32.xlu0 %v354, 96
    %v363 = vpop.permute.xlu0 %362
    %364 = vrot.lane.b32.xlu0 %v356, 96
    %v365 = vpop.permute.xlu0 %364
    %366 = vrot.lane.b32.xlu0 %v359, 96
    %v367 = vpop.permute.xlu0 %366
    %368 = vrot.lane.b32.xlu0 %v361, 96
    %v369 = vpop.permute.xlu0 %368
    %v374 = vrot.slane %v300, 4
    %v375 = vrot.slane %v290, 4
    %v376 = vsel %vm128, %v374, %v375
    %v377 = vrot.slane %v302, 4
    %v378 = vsel %vm128, %v375, %v377
    %v379 = vrot.slane %v301, 4
    %v380 = vrot.slane %v293, 4
    %v381 = vsel %vm128, %v379, %v380
    %v382 = vrot.slane %v303, 4
    %v383 = vsel %vm128, %v380, %v382
    %vm384 = vcmask 261120
    %v385 = vsel %vm384, %v300, %v319
    %v386 = vsel %vm384, %v290, %v321
    %v387 = vsel %vm384, %v301, %v323
    %v388 = vsel %vm384, %v293, %v325
    %vm389 = vcmask 523264
    %v390 = vsel %vm389, %v385, %v341
    %v391 = vsel %vm389, %v386, %v343
    %v392 = vsel %vm389, %v387, %v345
    %v393 = vsel %vm389, %v388, %v347
    %vm394 = vcmask 785408
    %v395 = vsel %vm394, %v390, %v363
    %v396 = vsel %vm394, %v391, %v365
    %v397 = vsel %vm394, %v392, %v367
    %v398 = vsel %vm394, %v393, %v369
    %v399 = vld [vmem:[%s4] sm:$0xff]
    %v400 = vld [vmem:[%s4 + $0x8] sm:$0xff]
    %v401 = vld [vmem:[%s4 + $0x10] sm:$0xff]
    %v402 = vld [vmem:[%s4 + $0x18] sm:$0xff]
    %v403 = vld [vmem:[%s4 + $0x20] sm:$0xff]
    %v404 = vld [vmem:[%s4 + $0x28] sm:$0xff]
    %v405 = vld [vmem:[%s4 + $0x30] sm:$0xff]
    %v406 = vld [vmem:[%s4 + $0x38] sm:$0xff]
    %v407 = vld [vmem:[%s4 + $0x40] sm:$0xff]
    %v408 = vld [vmem:[%s4 + $0x48] sm:$0xff]
    %v409 = vld [vmem:[%s4 + $0x50] sm:$0xff]
    %v410 = vld [vmem:[%s4 + $0x58] sm:$0xff]
    %v411 = vld [vmem:[%s4 + $0x60] sm:$0xff]
    %v412 = vld [vmem:[%s4 + $0x68] sm:$0xff]
    %v413 = vld [vmem:[%s4 + $0x70] sm:$0xff]
    %v414 = vld [vmem:[%s4 + $0x78] sm:$0xff]
    %v415 = vld [vmem:[%s4 + $0x80] sm:$0xff]
    %v416 = vld [vmem:[%s4 + $0x88] sm:$0xff]
    %v417 = vld [vmem:[%s4 + $0x90] sm:$0xff]
    %v418 = vld [vmem:[%s4 + $0x98] sm:$0xff]
    %v419 = vld [vmem:[%s5] sm:$0x1]
    %v421 = vlaneseq
    %v422 = vshrl.u32 %v421, 7
    %v423 = vsub.s32 0, %v422
    %v424 = vrot.slane %v419, %v423
    %v426 = vsel %vm384, %v376, 0
    %v428 = vsel %vm384, %v378, 0
    %v430 = vsel %vm384, %v381, 0
    %v432 = vsel %vm384, %v383, 0
    %434 = vmatprep.subr.mxu0 0.0
    %435 = vmatpush1.msra.mxu0 %v399
    %436 = vmatprep.subr.mxu0 0.0
    %437 = vmatpush1.msra.mxu0 %v400
    %438 = vmatprep.subr.mxu0 0.0
    %439 = vmatpush1.msra.mxu0 %v401
    %440 = vmatprep.subr.mxu0 0.0
    %441 = vmatpush1.msra.mxu0 %v402
    %442 = vmatprep.subr.mxu0 0.0
    %443 = vmatpush1.msra.mxu0 %v403
    %444 = vmatprep.subr.mxu0 0.0
    %445 = vmatpush1.msra.mxu0 %v404
    %446 = vmatprep.subr.mxu0 0.0
    %447 = vmatpush1.msra.mxu0 %v405
    %448 = vmatprep.subr.mxu0 0.0
    %449 = vmatpush1.msra.mxu0 %v406
    %450 = vmatprep.subr.mxu0 0.0
    %451 = vmatpush1.msra.mxu0 %v407
    %452 = vmatprep.subr.mxu0 0.0
    %453 = vmatpush1.msra.mxu0 %v408
    %454 = vmatprep.subr.mxu0 0.0
    %455 = vmatpush1.msra.mxu0 %v409
    %456 = vmatprep.subr.mxu0 0.0
    %457 = vmatpush1.msra.mxu0 %v410
    %458 = vmatprep.subr.mxu0 0.0
    %459 = vmatpush1.msra.mxu0 %v411
    %460 = vmatprep.subr.mxu0 0.0
    %461 = vmatpush1.msra.mxu0 %v412
    %462 = vmatprep.subr.mxu0 0.0
    %463 = vmatpush1.msra.mxu0 %v413
    %464 = vmatprep.subr.mxu0 0.0
    %465 = vmatpush1.msra.mxu0 %v414
    %466 = vmatprep.subr.mxu0 0.0
    %467 = vmatpush1.msra.mxu0 %v415
    %468 = vmatprep.subr.mxu0 0.0
    %469 = vmatpush1.msra.mxu0 %v416
    %470 = vmatprep.subr.mxu0 0.0
    %471 = vmatpush1.msra.mxu0 %v417
    %472 = vmatprep.subr.mxu0 0.0
    %473 = vmatpush1.msra.mxu0 %v418
    %474 = vmatprep.subr.mxu0 0.0
    %475 = vmatpush1.msra.mxu0 0.0
    %476 = vmatprep.subr.mxu0 0.0
    %477 = vmatpush1.msra.mxu0 0.0
    %478 = vmatprep.subr.mxu0 0.0
    %479 = vmatpush1.msra.mxu0 0.0
    %480 = vmatprep.subr.mxu0 0.0
    %481 = vmatpush1.msra.mxu0 0.0
    %482 = vmatprep.subr.mxu0 0.0
    %483 = vmatpush1.msra.mxu0 0.0
    %484 = vmatprep.subr.mxu0 0.0
    %485 = vmatpush1.msra.mxu0 0.0
    %486 = vmatprep.subr.mxu0 0.0
    %487 = vmatpush1.msra.mxu0 0.0
    %488 = vmatprep.subr.mxu0 0.0
    %489 = vmatpush1.msra.mxu0 0.0
    %490 = vmatprep.subr.mxu0 0.0
    %491 = vmatpush1.msra.mxu0 0.0
    %492 = vmatprep.subr.mxu0 0.0
    %493 = vmatpush1.msra.mxu0 0.0
    %494 = vmatprep.subr.mxu0 0.0
    %495 = vmatpush1.msra.mxu0 0.0
    %496 = vmatprep.subr.mxu0 0.0
    %497 = vmatpush1.msra.mxu0 0.0
    %498 = vmatprep.mubr.f32.mxu0 %v426
    %499 = vmatmul.mubr.f32.gmra.mrb[0].mxu0 %v395
    %v500 = vpop.f32.mrb[0].mxu0
    %v501 = vadd.f32 %v424, %v500
    %v502 = vpop.f32.mrb[0].mxu0
    %503 = vmatprep.mubr.f32.mxu0 %v428
    %504 = vmatmul.mubr.f32.gmra.mrb[0].mxu0 %v396
    %v505 = vpop.f32.mrb[0].mxu0
    %v506 = vadd.f32 %v424, %v505
    %v507 = vpop.f32.mrb[0].mxu0
    %508 = vmatprep.mubr.f32.mxu0 %v430
    %509 = vmatmul.mubr.f32.gmra.mrb[0].mxu0 %v397
    %v510 = vpop.f32.mrb[0].mxu0
    %v511 = vadd.f32 %v424, %v510
    %v512 = vpop.f32.mrb[0].mxu0
    %513 = vmatprep.mubr.f32.mxu0 %v432
    %514 = vmatmul.mubr.f32.gmra.mrb[0].mxu0 %v398
    %v515 = vpop.f32.mrb[0].mxu0
    %v516 = vadd.f32 %v424, %v515
    %v517 = vpop.f32.mrb[0].mxu0
    %518 = vdwg.mxu0
    %v519 = vmax.f32 %v501, 0.0
    %v520 = vmax.f32 %v506, 0.0
    %v521 = vmax.f32 %v511, 0.0
    %v522 = vmax.f32 %v516, 0.0
    %v527 = vrot.slane %v519, 1
    %v528 = vrot.slane %v520, 1
    %v529 = vsel %vm59, %v527, %v528
    %v530 = vrot.slane %v521, 1
    %v531 = vrot.slane %v522, 1
    %v532 = vsel %vm59, %v530, %v531
    %v537 = vmax.f32 %v519, %v529
    %v538 = vmax.f32 %v520, %v528
    %v539 = vmax.f32 %v521, %v532
    %v540 = vmax.f32 %v522, %v531
    %v543 = vrot.slane %v539, 7
    %vm544 = vcmask 1041409
    %v545 = vsel %vm544, %v543, %v537
    %v547 = vrot.slane %v537, 2
    %v548 = vrot.slane %v539, 1
    %v549 = vsel %vm544, %v548, %v547
    %550 = vrot.lane.b32.xlu0 %v549, 64
    %v551 = vpop.permute.xlu0 %550
    %v553 = vrot.slane %v537, 4
    %v554 = vrot.slane %v539, 3
    %v555 = vsel %vm544, %v554, %v553
    %v557 = vrot.slane %v537, 6
    %v558 = vrot.slane %v539, 5
    %v559 = vsel %vm544, %v558, %v557
    %560 = vrot.lane.b32.xlu0 %v559, 64
    %v561 = vpop.permute.xlu0 %560
    %v565 = vrot.slane %v540, 7
    %v566 = vsel %vm544, %v565, %v538
    %v568 = vrot.slane %v538, 2
    %v569 = vrot.slane %v540, 1
    %v570 = vsel %vm544, %v569, %v568
    %571 = vrot.lane.b32.xlu0 %v570, 64
    %v572 = vpop.permute.xlu0 %571
    %v574 = vrot.slane %v538, 4
    %v575 = vrot.slane %v540, 3
    %v576 = vsel %vm544, %v575, %v574
    %v578 = vrot.slane %v538, 6
    %v579 = vrot.slane %v540, 5
    %v580 = vsel %vm544, %v579, %v578
    %581 = vrot.lane.b32.xlu0 %v580, 64
    %v582 = vpop.permute.xlu0 %581
    %v584 = vsel %vm389, %v545, %v551
    %v585 = vsel %vm389, %v555, %v561
    %v586 = vsel %vm389, %v566, %v572
    %v587 = vsel %vm389, %v576, %v582
    %v588 = vld [vmem:[%s1] sm:$0x3]
    %v589 = vld [vmem:[%s6] sm:$0xff]
    %v590 = vld [vmem:[%s6 + $0x8] sm:$0xff]
    %v591 = vld [vmem:[%s6 + $0x10] sm:$0xff]
    %v592 = vld [vmem:[%s6 + $0x18] sm:$0xff]
    %v593 = vld [vmem:[%s6 + $0x20] sm:$0xff]
    %v594 = vld [vmem:[%s6 + $0x28] sm:$0xff]
    %v595 = vld [vmem:[%s6 + $0x30] sm:$0xff]
    %v596 = vld [vmem:[%s6 + $0x38] sm:$0xff]
    %v597 = vld [vmem:[%s6 + $0x40] sm:$0xff]
    %v598 = vld [vmem:[%s6 + $0x48] sm:$0xff]
    %v599 = vld [vmem:[%s6 + $0x50] sm:$0xff]
    %v600 = vld [vmem:[%s6 + $0x58] sm:$0xff]
    %v601 = vld [vmem:[%s6 + $0x60] sm:$0xff]
    %v602 = vld [vmem:[%s6 + $0x68] sm:$0xff]
    %v603 = vld [vmem:[%s6 + $0x70] sm:$0xff]
    %v604 = vld [vmem:[%s6 + $0x78] sm:$0xff]
    %v605 = vld [vmem:[%s6 + $0x80] sm:$0xff]
    %v606 = vld [vmem:[%s6 + $0x88] sm:$0xff]
    %v607 = vld [vmem:[%s6 + $0x90] sm:$0xff]
    %v608 = vld [vmem:[%s6 + $0x98] sm:$0xff]
    %v609 = vld [vmem:[%s6 + $0xa0] sm:$0xff]
    %v610 = vld [vmem:[%s6 + $0xa8] sm:$0xff]
    %v611 = vld [vmem:[%s6 + $0xb0] sm:$0xff]
    %v612 = vld [vmem:[%s6 + $0xb8] sm:$0xff]
    %v613 = vld [vmem:[%s6 + $0xc0] sm:$0xff]
    %v614 = vld [vmem:[%s6 + $0xc8] sm:$0xff]
    %v615 = vld [vmem:[%s6 + $0xd0] sm:$0xff]
    %v616 = vld [vmem:[%s6 + $0xd8] sm:$0xff]
    %v617 = vld [vmem:[%s6 + $0xe0] sm:$0xff]
    %v618 = vld [vmem:[%s6 + $0xe8] sm:$0xff]
    %v619 = vld [vmem:[%s6 + $0xf0] sm:$0xff]
    %v620 = vld [vmem:[%s6 + $0xf8] sm:$0xff]
    %v621 = vld [vmem:[%s6 + $0x100] sm:$0xff]
    %v622 = vld [vmem:[%s6 + $0x108] sm:$0xff]
    %v623 = vld [vmem:[%s6 + $0x110] sm:$0xff]
    %v624 = vld [vmem:[%s6 + $0x118] sm:$0xff]
    %v625 = vld [vmem:[%s6 + $0x120] sm:$0xff]
    %v626 = vld [vmem:[%s6 + $0x128] sm:$0xff]
    %v627 = vld [vmem:[%s6 + $0x130] sm:$0xff]
    %v628 = vld [vmem:[%s6 + $0x138] sm:$0xff]
    %v629 = vld [vmem:[%s6 + $0x140] sm:$0xff]
    %v630 = vld [vmem:[%s6 + $0x148] sm:$0xff]
    %v631 = vld [vmem:[%s6 + $0x150] sm:$0xff]
    %v632 = vld [vmem:[%s6 + $0x158] sm:$0xff]
    %v633 = vld [vmem:[%s6 + $0x160] sm:$0xff]
    %v634 = vld [vmem:[%s6 + $0x168] sm:$0xff]
    %v635 = vld [vmem:[%s6 + $0x170] sm:$0xff]
    %v636 = vld [vmem:[%s6 + $0x178] sm:$0xff]
    %v637 = vld [vmem:[%s6 + $0x180] sm:$0xff]
    %v638 = vld [vmem:[%s6 + $0x188] sm:$0xff]
    %v639 = vld [vmem:[%s6 + $0x190] sm:$0xff]
    %v640 = vld [vmem:[%s6 + $0x198] sm:$0xff]
    %v641 = vld [vmem:[%s6 + $0x1a0] sm:$0xff]
    %v642 = vld [vmem:[%s6 + $0x1a8] sm:$0xff]
    %v643 = vld [vmem:[%s6 + $0x1b0] sm:$0xff]
    %v644 = vld [vmem:[%s6 + $0x1b8] sm:$0xff]
    %v645 = vld [vmem:[%s6 + $0x1c0] sm:$0xff]
    %v646 = vld [vmem:[%s6 + $0x1c8] sm:$0xff]
    %v647 = vld [vmem:[%s6 + $0x1d0] sm:$0xff]
    %v648 = vld [vmem:[%s6 + $0x1d8] sm:$0xff]
    %v649 = vld [vmem:[%s6 + $0x1e0] sm:$0xff]
    %v650 = vld [vmem:[%s6 + $0x1e8] sm:$0xff]
    %v651 = vld [vmem:[%s6 + $0x1f0] sm:$0xff]
    %v652 = vld [vmem:[%s6 + $0x1f8] sm:$0xff]
    %v653 = vld [vmem:[%s6 + $0x200] sm:$0xf]
    %v654 = vld [vmem:[%s7] sm:$0x1]
    %v656 = vlaneseq
    %v657 = vshrl.u32 %v656, 7
    %v658 = vsub.s32 0, %v657
    %v659 = vrot.slane %v654, %v658
    %v662 = vsel %vm166, %v588, 0
    %v665 = vsel %vm128, %v653, 0
    %667 = vmatprep.subr.mxu0 0.0
    %668 = vmatpush1.msra.mxu0 %v589
    %669 = vmatprep.subr.mxu0 0.0
    %670 = vmatpush1.msra.mxu0 %v590
    %671 = vmatprep.subr.mxu0 0.0
    %672 = vmatpush1.msra.mxu0 %v591
    %673 = vmatprep.subr.mxu0 0.0
    %674 = vmatpush1.msra.mxu0 %v592
    %675 = vmatprep.subr.mxu0 0.0
    %676 = vmatpush1.msra.mxu0 %v593
    %677 = vmatprep.subr.mxu0 0.0
    %678 = vmatpush1.msra.mxu0 %v594
    %679 = vmatprep.subr.mxu0 0.0
    %680 = vmatpush1.msra.mxu0 %v595
    %681 = vmatprep.subr.mxu0 0.0
    %682 = vmatpush1.msra.mxu0 %v596
    %683 = vmatprep.subr.mxu0 0.0
    %684 = vmatpush1.msra.mxu0 %v597
    %685 = vmatprep.subr.mxu0 0.0
    %686 = vmatpush1.msra.mxu0 %v598
    %687 = vmatprep.subr.mxu0 0.0
    %688 = vmatpush1.msra.mxu0 %v599
    %689 = vmatprep.subr.mxu0 0.0
    %690 = vmatpush1.msra.mxu0 %v600
    %691 = vmatprep.subr.mxu0 0.0
    %692 = vmatpush1.msra.mxu0 %v601
    %693 = vmatprep.subr.mxu0 0.0
    %694 = vmatpush1.msra.mxu0 %v602
    %695 = vmatprep.subr.mxu0 0.0
    %696 = vmatpush1.msra.mxu0 %v603
    %697 = vmatprep.subr.mxu0 0.0
    %698 = vmatpush1.msra.mxu0 %v604
    %699 = vmatprep.subr.mxu0 0.0
    %700 = vmatpush1.msra.mxu0 %v605
    %701 = vmatprep.subr.mxu0 0.0
    %702 = vmatpush1.msra.mxu0 %v606
    %703 = vmatprep.subr.mxu0 0.0
    %704 = vmatpush1.msra.mxu0 %v607
    %705 = vmatprep.subr.mxu0 0.0
    %706 = vmatpush1.msra.mxu0 %v608
    %707 = vmatprep.subr.mxu0 0.0
    %708 = vmatpush1.msra.mxu0 %v609
    %709 = vmatprep.subr.mxu0 0.0
    %710 = vmatpush1.msra.mxu0 %v610
    %711 = vmatprep.subr.mxu0 0.0
    %712 = vmatpush1.msra.mxu0 %v611
    %713 = vmatprep.subr.mxu0 0.0
    %714 = vmatpush1.msra.mxu0 %v612
    %715 = vmatprep.subr.mxu0 0.0
    %716 = vmatpush1.msra.mxu0 %v613
    %717 = vmatprep.subr.mxu0 0.0
    %718 = vmatpush1.msra.mxu0 %v614
    %719 = vmatprep.subr.mxu0 0.0
    %720 = vmatpush1.msra.mxu0 %v615
    %721 = vmatprep.subr.mxu0 0.0
    %722 = vmatpush1.msra.mxu0 %v616
    %723 = vmatprep.subr.mxu0 0.0
    %724 = vmatpush1.msra.mxu0 %v617
    %725 = vmatprep.subr.mxu0 0.0
    %726 = vmatpush1.msra.mxu0 %v618
    %727 = vmatprep.subr.mxu0 0.0
    %728 = vmatpush1.msra.mxu0 %v619
    %729 = vmatprep.subr.mxu0 0.0
    %730 = vmatpush1.msra.mxu0 %v620
    %731 = vmatprep.mubr.f32.mxu0 %v585
    %732 = vmatmul.mubr.f32.gmra.mrb[0].mxu0 %v584
    %v733 = vpop.f32.mrb[0].mxu0
    %v734 = vadd.f32 %v659, %v733
    %v735 = vpop.f32.mrb[0].mxu0
    %736 = vdwg.mxu0
    %737 = vmatprep.subr.mxu0 0.0
    %738 = vmatpush1.msra.mxu0 %v621
    %739 = vmatprep.subr.mxu0 0.0
    %740 = vmatpush1.msra.mxu0 %v622
    %741 = vmatprep.subr.mxu0 0.0
    %742 = vmatpush1.msra.mxu0 %v623
    %743 = vmatprep.subr.mxu0 0.0
    %744 = vmatpush1.msra.mxu0 %v624
    %745 = vmatprep.subr.mxu0 0.0
    %746 = vmatpush1.msra.mxu0 %v625
    %747 = vmatprep.subr.mxu0 0.0
    %748 = vmatpush1.msra.mxu0 %v626
    %749 = vmatprep.subr.mxu0 0.0
    %750 = vmatpush1.msra.mxu0 %v627
    %751 = vmatprep.subr.mxu0 0.0
    %752 = vmatpush1.msra.mxu0 %v628
    %753 = vmatprep.subr.mxu0 0.0
    %754 = vmatpush1.msra.mxu0 %v629
    %755 = vmatprep.subr.mxu0 0.0
    %756 = vmatpush1.msra.mxu0 %v630
    %757 = vmatprep.subr.mxu0 0.0
    %758 = vmatpush1.msra.mxu0 %v631
    %759 = vmatprep.subr.mxu0 0.0
    %760 = vmatpush1.msra.mxu0 %v632
    %761 = vmatprep.subr.mxu0 0.0
    %762 = vmatpush1.msra.mxu0 %v633
    %763 = vmatprep.subr.mxu0 0.0
    %764 = vmatpush1.msra.mxu0 %v634
    %765 = vmatprep.subr.mxu0 0.0
    %766 = vmatpush1.msra.mxu0 %v635
    %767 = vmatprep.subr.mxu0 0.0
    %768 = vmatpush1.msra.mxu0 %v636
    %769 = vmatprep.subr.mxu0 0.0
    %770 = vmatpush1.msra.mxu0 %v637
    %771 = vmatprep.subr.mxu0 0.0
    %772 = vmatpush1.msra.mxu0 %v638
    %773 = vmatprep.subr.mxu0 0.0
    %774 = vmatpush1.msra.mxu0 %v639
    %775 = vmatprep.subr.mxu0 0.0
    %776 = vmatpush1.msra.mxu0 %v640
    %777 = vmatprep.subr.mxu0 0.0
    %778 = vmatpush1.msra.mxu0 %v641
    %779 = vmatprep.subr.mxu0 0.0
    %780 = vmatpush1.msra.mxu0 %v642
    %781 = vmatprep.subr.mxu0 0.0
    %782 = vmatpush1.msra.mxu0 %v643
    %783 = vmatprep.subr.mxu0 0.0
    %784 = vmatpush1.msra.mxu0 %v644
    %785 = vmatprep.subr.mxu0 0.0
    %786 = vmatpush1.msra.mxu0 %v645
    %787 = vmatprep.subr.mxu0 0.0
    %788 = vmatpush1.msra.mxu0 %v646
    %789 = vmatprep.subr.mxu0 0.0
    %790 = vmatpush1.msra.mxu0 %v647
    %791 = vmatprep.subr.mxu0 0.0
    %792 = vmatpush1.msra.mxu0 %v648
    %793 = vmatprep.subr.mxu0 0.0
    %794 = vmatpush1.msra.mxu0 %v649
    %795 = vmatprep.subr.mxu0 0.0
    %796 = vmatpush1.msra.mxu0 %v650
    %797 = vmatprep.subr.mxu0 0.0
    %798 = vmatpush1.msra.mxu0 %v651
    %799 = vmatprep.subr.mxu0 0.0
    %800 = vmatpush1.msra.mxu0 %v652
    %801 = vmatprep.mubr.f32.mxu0 %v587
    %802 = vmatmul.mubr.f32.gmra.mrb[0].mxu0 %v586
    %v803 = vpop.f32.mrb[0].mxu0
    %v804 = vadd.f32 %v734, %v803
    %v805 = vpop.f32.mrb[0].mxu0
    %806 = vdwg.mxu0
    %807 = vmatprep.subr.mxu0 0.0
    %808 = vmatpush1.msra.mxu0 %v665
    %809 = vmatprep.subr.mxu0 0.0
    %810 = vmatpush1.msra.mxu0 0.0
    %811 = vmatprep.subr.mxu0 0.0
    %812 = vmatpush1.msra.mxu0 0.0
    %813 = vmatprep.subr.mxu0 0.0
    %814 = vmatpush1.msra.mxu0 0.0
    %815 = vmatprep.subr.mxu0 0.0
    %816 = vmatpush1.msra.mxu0 0.0
    %817 = vmatprep.subr.mxu0 0.0
    %818 = vmatpush1.msra.mxu0 0.0
    %819 = vmatprep.subr.mxu0 0.0
    %820 = vmatpush1.msra.mxu0 0.0
    %821 = vmatprep.subr.mxu0 0.0
    %822 = vmatpush1.msra.mxu0 0.0
    %823 = vmatprep.subr.mxu0 0.0
    %824 = vmatpush1.msra.mxu0 0.0
    %825 = vmatprep.subr.mxu0 0.0
    %826 = vmatpush1.msra.mxu0 0.0
    %827 = vmatprep.subr.mxu0 0.0
    %828 = vmatpush1.msra.mxu0 0.0
    %829 = vmatprep.subr.mxu0 0.0
    %830 = vmatpush1.msra.mxu0 0.0
    %831 = vmatprep.subr.mxu0 0.0
    %832 = vmatpush1.msra.mxu0 0.0
    %833 = vmatprep.subr.mxu0 0.0
    %834 = vmatpush1.msra.mxu0 0.0
    %835 = vmatprep.subr.mxu0 0.0
    %836 = vmatpush1.msra.mxu0 0.0
    %837 = vmatprep.subr.mxu0 0.0
    %838 = vmatpush1.msra.mxu0 0.0
    %839 = vmatprep.subr.mxu0 0.0
    %840 = vmatpush1.msra.mxu0 0.0
    %841 = vmatprep.subr.mxu0 0.0
    %842 = vmatpush1.msra.mxu0 0.0
    %843 = vmatprep.subr.mxu0 0.0
    %844 = vmatpush1.msra.mxu0 0.0
    %845 = vmatprep.subr.mxu0 0.0
    %846 = vmatpush1.msra.mxu0 0.0
    %847 = vmatprep.subr.mxu0 0.0
    %848 = vmatpush1.msra.mxu0 0.0
    %849 = vmatprep.subr.mxu0 0.0
    %850 = vmatpush1.msra.mxu0 0.0
    %851 = vmatprep.subr.mxu0 0.0
    %852 = vmatpush1.msra.mxu0 0.0
    %853 = vmatprep.subr.mxu0 0.0
    %854 = vmatpush1.msra.mxu0 0.0
    %855 = vmatprep.subr.mxu0 0.0
    %856 = vmatpush1.msra.mxu0 0.0
    %857 = vmatprep.subr.mxu0 0.0
    %858 = vmatpush1.msra.mxu0 0.0
    %859 = vmatprep.subr.mxu0 0.0
    %860 = vmatpush1.msra.mxu0 0.0
    %861 = vmatprep.subr.mxu0 0.0
    %862 = vmatpush1.msra.mxu0 0.0
    %863 = vmatprep.subr.mxu0 0.0
    %864 = vmatpush1.msra.mxu0 0.0
    %865 = vmatprep.subr.mxu0 0.0
    %866 = vmatpush1.msra.mxu0 0.0
    %867 = vmatprep.subr.mxu0 0.0
    %868 = vmatpush1.msra.mxu0 0.0
    %869 = vmatprep.subr.mxu0 0.0
    %870 = vmatpush1.msra.mxu0 0.0
    %871 = vmatprep.mubr.f32.mxu0 0.0
    %872 = vmatmul.mubr.f32.gmra.mrb[0].mxu0 %v662
    %v873 = vpop.f32.mrb[0].mxu0
    %v874 = vadd.f32 %v804, %v873
    %v875 = vpop.f32.mrb[0].mxu0
    %876 = vdwg.mxu0
    %vm877 = vcmask 156672
    %878 = vst.msk [vmem:[#allocation2] sm:$0x3] %vm877, %v874
    // Predicated region
    $region34: #{_encode.1} parent=1 // pred_check
      _
    $region35: #{_encode.1} parent=1 // pred_check_branch
      %880 = sbr.rel (0) target = $region37
    $region36: #{_encode.1} parent=1 // pred_region
      %s882 = ssub.s32 32, 32
      %883 = vsyncadd [#allocation3], %s882
      %s885 = sshll.u32 [#allocation2], 4
      %s886 = int_to_ptr.vmem [resolvable:$true] %s885
      %888 = dma.vmem_to_hbm [thread:$0]  %s886, 32, %s8, [#allocation3]
    $region37: #{_encode.1} parent=1 // pred_fallthru
      _
    // Predicated region
    $region38: #{_encode.1} parent=1 // pred_check
      _
    $region39: #{_encode.1} parent=1 // pred_check_branch
      %890 = sbr.rel (0) target = $region41
    $region40: #{_encode.1} parent=1 // pred_region
      %891 = dma.done [#allocation3], 32
    $region41: #{_encode.1} parent=1 // pred_fallthru
      _
    %892 = vsyncpa [#allocation3], 1

</llo_original>
